<compile_context>
chip_gen: v7x
topology: tpu7x:2x2x1
jax: 0.10.0
libtpu: 0.0.40
codegen_flags: <defaults>
</compile_context>

<pallas_src>
import jax
import jax.numpy as jnp
from jax.experimental import pallas as pl
from jax.experimental.pallas import tpu as pltpu


def _round_up(x, m):
    return ((x + m - 1) // m) * m


def mlp_kernel(x_ref, w1_ref, b1_ref, w2_ref, b2_ref, w3_ref, b3_ref, o_ref):
    # Whole forward pass fused: 3 MXU matmuls + VPU bias adds + one ReLU.
    # Weights arrive pre-transposed as [K, N]; biases as [1, N].
    x = x_ref[...]                                                    # [TB, D_in]
    h = jnp.dot(x, w1_ref[...], preferred_element_type=jnp.float32)
    h = jnp.maximum(h + b1_ref[...], 0.0)                             # ReLU (clamp(min=0))
    h = jnp.dot(h, w2_ref[...], preferred_element_type=jnp.float32)
    h = h + b2_ref[...]                                               # no ReLU (matches module)
    y = jnp.dot(h, w3_ref[...], preferred_element_type=jnp.float32)
    y = y + b3_ref[...]                                               # [TB, D_out_p]
    o_ref[...] = y.astype(o_ref.dtype)


def two_layer_net_forward(x, params, tile_b=256):
    """x: [B, D_in] f32; params: PyTorch-style (w[out,in], b[out]) x 3."""
    w1, b1, w2, b2, w3, b3 = params
    B, D_in = x.shape
    H = w1.shape[0]
    D_out = w3.shape[0]

    # Lane-dense padded sizes (last dims -> multiples of 128).
    H_p = _round_up(H, 128)
    D_out_p = _round_up(D_out, 128)

    # Batch tile: multiple of 8 sublanes; big tiles for real batches.
    TB = min(tile_b, _round_up(B, 8))
    B_p = _round_up(B, TB)

    f32 = jnp.float32

    def pad_to(a, shape):
        out = jnp.zeros(shape, f32)
        return out.at[tuple(slice(0, s) for s in a.shape)].set(a.astype(f32))

    # Pre-transpose weights to [in, out] and zero-pad. Zero padding is safe:
    # padded H lanes are 0 after bias+ReLU, padded K rows contribute 0 to the
    # next matmul, and padded output lanes are sliced away below.
    xw = pad_to(x, (B_p, D_in))
    w1t = pad_to(w1.T, (D_in, H_p))
    b1p = pad_to(b1.reshape(1, -1), (1, H_p))
    w2t = pad_to(w2.T, (H_p, H_p))
    b2p = pad_to(b2.reshape(1, -1), (1, H_p))
    w3t = pad_to(w3.T, (H_p, D_out_p))
    b3p = pad_to(b3.reshape(1, -1), (1, D_out_p))

    grid = (B_p // TB,)
    const = lambda i: (0, 0)   # weights/biases: same block every step -> VMEM-resident

    y_pad = pl.pallas_call(
        mlp_kernel,
        out_shape=jax.ShapeDtypeStruct((B_p, D_out_p), f32),
        grid=grid,
        in_specs=[
            pl.BlockSpec((TB, D_in), lambda i: (i, 0)),     # x: tiled over batch
            pl.BlockSpec((D_in, H_p), const),               # w1^T
            pl.BlockSpec((1, H_p), const),                  # b1
            pl.BlockSpec((H_p, H_p), const),                # w2^T
            pl.BlockSpec((1, H_p), const),                  # b2
            pl.BlockSpec((H_p, D_out_p), const),            # w3^T
            pl.BlockSpec((1, D_out_p), const),              # b3
        ],
        out_specs=pl.BlockSpec((TB, D_out_p), lambda i: (i, 0)),
        compiler_params=pltpu.CompilerParams(
            dimension_semantics=("parallel",),
        ),
    )(xw, w1t, b1p, w2t, b2p, w3t, b3p)

    return y_pad[:B, :D_out]


def init_params(key, D_in, H, D_out):
    # Deterministic synthetic init (PyTorch Linear-style uniform bounds),
    # stored PyTorch-style: w[out_features, in_features], b[out_features].
    ks = jax.random.split(key, 6)

    def lin(kw, kb, fan_in, fan_out):
        bound = 1.0 / jnp.sqrt(fan_in)
        w = jax.random.uniform(kw, (fan_out, fan_in), jnp.float32, -bound, bound)
        b = jax.random.uniform(kb, (fan_out,), jnp.float32, -bound, bound)
        return w, b

    w1, b1 = lin(ks[0], ks[1], D_in, H)
    w2, b2 = lin(ks[2], ks[3], H, H)
    w3, b3 = lin(ks[4], ks[5], H, D_out)
    return (w1, b1, w2, b2, w3, b3)


def reference_forward(x, params):
    w1, b1, w2, b2, w3, b3 = params
    h = jnp.maximum(x @ w1.T + b1, 0.0)
    h = h @ w2.T + b2
    return h @ w3.T + b3


if __name__ == "__main__":
    # Small shapes consistent with the source module (H = 13, D_out = 2).
    B, D_in, H, D_out = 8, 32, 13, 2

    key = jax.random.PRNGKey(0)
    kx, kp = jax.random.split(key)
    x = jax.random.normal(kx, (B, D_in), dtype=jnp.float32)
    params = init_params(kp, D_in, H, D_out)

    y = two_layer_net_forward(x, params)
    jax.block_until_ready(y)

    y_ref = reference_forward(x, params)
    assert y.shape == (B, D_out)
    assert jnp.allclose(y, y_ref, atol=1e-5, rtol=1e-5)

    # Larger batch exercises the batch grid / resident-weight path.
    B2 = 1000
    x2 = jax.random.normal(jax.random.PRNGKey(1), (B2, D_in), dtype=jnp.float32)
    y2 = two_layer_net_forward(x2, params)
    jax.block_until_ready(y2)
    assert y2.shape == (B2, D_out)
    assert jnp.allclose(y2, reference_forward(x2, params), atol=1e-5, rtol=1e-5)

    print("KERNEL_OK")
</pallas_src>

<mosaic_0001>
module attributes {stable_mosaic.version = 11 : i64} {
  func.func @mlp_kernel(%arg0: i32, %arg1: memref<8x32xf32, #tpu.memory_space<vmem>>, %arg2: memref<32x128xf32, #tpu.memory_space<vmem>>, %arg3: memref<1x128xf32, #tpu.memory_space<vmem>>, %arg4: memref<128x128xf32, #tpu.memory_space<vmem>>, %arg5: memref<1x128xf32, #tpu.memory_space<vmem>>, %arg6: memref<128x128xf32, #tpu.memory_space<vmem>>, %arg7: memref<1x128xf32, #tpu.memory_space<vmem>>, %arg8: memref<8x128xf32, #tpu.memory_space<vmem>>) attributes {dimension_semantics = [#tpu.dimension_semantics<parallel>], iteration_bounds = array<i64: 1>, scalar_prefetch = 0 : i64, scratch_operands = 0 : i64, tpu.core_type = #tpu.core_type<tc>, window_params = [{transform_indices = @transform_0, window_bounds = array<i64: 8, 32>}, {pipeline_mode = #tpu.pipeline_mode<synchronous>, transform_indices = @transform_1, window_bounds = array<i64: 32, 128>}, {pipeline_mode = #tpu.pipeline_mode<synchronous>, transform_indices = @transform_2, window_bounds = array<i64: 1, 128>}, {pipeline_mode = #tpu.pipeline_mode<synchronous>, transform_indices = @transform_3, window_bounds = array<i64: 128, 128>}, {pipeline_mode = #tpu.pipeline_mode<synchronous>, transform_indices = @transform_4, window_bounds = array<i64: 1, 128>}, {pipeline_mode = #tpu.pipeline_mode<synchronous>, transform_indices = @transform_5, window_bounds = array<i64: 128, 128>}, {pipeline_mode = #tpu.pipeline_mode<synchronous>, transform_indices = @transform_6, window_bounds = array<i64: 1, 128>}, {transform_indices = @transform_7, window_bounds = array<i64: 8, 128>}]} {
    %c0 = arith.constant 0 : index
    %c0_0 = arith.constant 0 : index
    %0 = vector.load %arg1[%c0, %c0_0] : memref<8x32xf32, #tpu.memory_space<vmem>>, vector<8x32xf32>
    %c0_1 = arith.constant 0 : index
    %c0_2 = arith.constant 0 : index
    %1 = vector.load %arg2[%c0_1, %c0_2] : memref<32x128xf32, #tpu.memory_space<vmem>>, vector<32x128xf32>
    %cst = arith.constant dense<0.000000e+00> : vector<8x128xf32>
    %2 = tpu.matmul %0, %1, %cst {dimension_numbers = #tpu.dot_dimension_numbers<[1], [0], [0], [1], [0, 0, 1, 1], [], []>} : vector<8x32xf32>, vector<32x128xf32>, vector<8x128xf32> -> vector<8x128xf32>
    %c0_3 = arith.constant 0 : index
    %c0_4 = arith.constant 0 : index
    %3 = vector.load %arg3[%c0_3, %c0_4] : memref<1x128xf32, #tpu.memory_space<vmem>>, vector<1x128xf32>
    %4 = vector.broadcast %3 : vector<1x128xf32> to vector<8x128xf32>
    %5 = arith.addf %2, %4 : vector<8x128xf32>
    %cst_5 = arith.constant 0.000000e+00 : f32
    %6 = vector.broadcast %cst_5 : f32 to vector<8x128xf32>
    %7 = arith.maximumf %5, %6 : vector<8x128xf32>
    %c0_6 = arith.constant 0 : index
    %c0_7 = arith.constant 0 : index
    %8 = vector.load %arg4[%c0_6, %c0_7] : memref<128x128xf32, #tpu.memory_space<vmem>>, vector<128x128xf32>
    %cst_8 = arith.constant dense<0.000000e+00> : vector<8x128xf32>
    %9 = tpu.matmul %7, %8, %cst_8 {dimension_numbers = #tpu.dot_dimension_numbers<[1], [0], [0], [1], [0, 0, 1, 1], [], []>} : vector<8x128xf32>, vector<128x128xf32>, vector<8x128xf32> -> vector<8x128xf32>
    %c0_9 = arith.constant 0 : index
    %c0_10 = arith.constant 0 : index
    %10 = vector.load %arg5[%c0_9, %c0_10] : memref<1x128xf32, #tpu.memory_space<vmem>>, vector<1x128xf32>
    %11 = vector.broadcast %10 : vector<1x128xf32> to vector<8x128xf32>
    %12 = arith.addf %9, %11 : vector<8x128xf32>
    %c0_11 = arith.constant 0 : index
    %c0_12 = arith.constant 0 : index
    %13 = vector.load %arg6[%c0_11, %c0_12] : memref<128x128xf32, #tpu.memory_space<vmem>>, vector<128x128xf32>
    %cst_13 = arith.constant dense<0.000000e+00> : vector<8x128xf32>
    %14 = tpu.matmul %12, %13, %cst_13 {dimension_numbers = #tpu.dot_dimension_numbers<[1], [0], [0], [1], [0, 0, 1, 1], [], []>} : vector<8x128xf32>, vector<128x128xf32>, vector<8x128xf32> -> vector<8x128xf32>
    %c0_14 = arith.constant 0 : index
    %c0_15 = arith.constant 0 : index
    %15 = vector.load %arg7[%c0_14, %c0_15] : memref<1x128xf32, #tpu.memory_space<vmem>>, vector<1x128xf32>
    %16 = vector.broadcast %15 : vector<1x128xf32> to vector<8x128xf32>
    %17 = arith.addf %14, %16 : vector<8x128xf32>
    %c0_16 = arith.constant 0 : index
    %c0_17 = arith.constant 0 : index
    %18 = vector.load %arg8[%c0_16, %c0_17] : memref<8x128xf32, #tpu.memory_space<vmem>>, vector<8x128xf32>
    tpu.vector_store %arg8[%c0_16, %c0_17], %17 {strides = array<i32>} : memref<8x128xf32, #tpu.memory_space<vmem>>, vector<8x128xf32>,
    return
  }
  func.func @transform_0(%arg0: i32) -> (i32, i32) {
    %c0_i32 = arith.constant 0 : i32
    %c0_i32_0 = arith.constant 0 : i32
    return %arg0, %c0_i32 : i32, i32
  }
  func.func @transform_1(%arg0: i32) -> (i32, i32) {
    %c0_i32 = arith.constant 0 : i32
    %c0_i32_0 = arith.constant 0 : i32
    %c0_i32_1 = arith.constant 0 : i32
    return %c0_i32, %c0_i32_0 : i32, i32
  }
  func.func @transform_2(%arg0: i32) -> (i32, i32) {
    %c0_i32 = arith.constant 0 : i32
    %c0_i32_0 = arith.constant 0 : i32
    %c0_i32_1 = arith.constant 0 : i32
    return %c0_i32, %c0_i32_0 : i32, i32
  }
  func.func @transform_3(%arg0: i32) -> (i32, i32) {
    %c0_i32 = arith.constant 0 : i32
    %c0_i32_0 = arith.constant 0 : i32
    %c0_i32_1 = arith.constant 0 : i32
    return %c0_i32, %c0_i32_0 : i32, i32
  }
  func.func @transform_4(%arg0: i32) -> (i32, i32) {
    %c0_i32 = arith.constant 0 : i32
    %c0_i32_0 = arith.constant 0 : i32
    %c0_i32_1 = arith.constant 0 : i32
    return %c0_i32, %c0_i32_0 : i32, i32
  }
  func.func @transform_5(%arg0: i32) -> (i32, i32) {
    %c0_i32 = arith.constant 0 : i32
    %c0_i32_0 = arith.constant 0 : i32
    %c0_i32_1 = arith.constant 0 : i32
    return %c0_i32, %c0_i32_0 : i32, i32
  }
  func.func @transform_6(%arg0: i32) -> (i32, i32) {
    %c0_i32 = arith.constant 0 : i32
    %c0_i32_0 = arith.constant 0 : i32
    %c0_i32_1 = arith.constant 0 : i32
    return %c0_i32, %c0_i32_0 : i32, i32
  }
  func.func @transform_7(%arg0: i32) -> (i32, i32) {
    %c0_i32 = arith.constant 0 : i32
    %c0_i32_0 = arith.constant 0 : i32
    return %arg0, %c0_i32 : i32, i32
  }
}

</mosaic_0001>

<llo_original>
// kernel: tpu_custom_call.1
$region0: #{tpu_custom_call.1}
  #allocation0 [shape = 'u32[]', space=smem, size = 0x4, offset = 0x4, fixed_abs, tag = 'smem constant byte address 0x4 - core index']
  #allocation1 [shape = 'u32[144,128]{1,0:T(1,128)}', space=vmem, size = 0x12000, scoped, tag = 'internal scratch']
  %s0 = inlined_call_operand.hbm [shape: f32[8,32], index: 0, kind: input, shape index: {}]
  %s1 = inlined_call_operand.hbm [shape: f32[32,128], index: 1, kind: input, shape index: {}]
  %s2 = inlined_call_operand.vmem [shape: f32[1,128], index: 2, kind: input, shape index: {}]
  %s3 = inlined_call_operand.hbm [shape: f32[128,128], index: 3, kind: input, shape index: {}]
  %s4 = inlined_call_operand.vmem [shape: f32[1,128], index: 4, kind: input, shape index: {}]
  %s5 = inlined_call_operand.hbm [shape: f32[128,128], index: 5, kind: input, shape index: {}]
  %s6 = inlined_call_operand.vmem [shape: f32[1,128], index: 6, kind: input, shape index: {}]
  %s7 = inlined_call_operand.hbm [shape: f32[8,128], index: 7, kind: output, shape index: {}]
  %s8 = sld [smem:[#allocation0]]
  $region54: #{tpu_custom_call.1} parent=0
    _
  %s10 = ssub.s32 1, %s8
  %s11 = scalar_select 0, %s10, %s8
  $region1: #{tpu_custom_call.1} parent=0
    #allocation2 [shape = 'u8[4096]{0}', space=vmem, size = 0x1000, scoped, tag = 'input window, operand 0, single buffered']
    #allocation3 [shape = 's32[1]{0}', space=sflag, size = 0x4, scoped, tag = 'scoped memory for tpu_custom_call.1']
    #allocation4 [shape = 's32[1]{0}', space=sflag, size = 0x4, scoped, tag = 'scoped memory for tpu_custom_call.1']
    #allocation5 [shape = 'u8[16384]{0}', space=vmem, size = 0x4000, scoped, tag = 'input window, operand 1, single buffered']
    #allocation6 [shape = 's32[1]{0}', space=sflag, size = 0x4, scoped, tag = 'scoped memory for tpu_custom_call.1']
    #allocation7 [shape = 'u8[65536]{0}', space=vmem, size = 0x10000, scoped, tag = 'input window, operand 3, single buffered']
    #allocation8 [shape = 'u8[65536]{0}', space=vmem, size = 0x10000, scoped, tag = 'input window, operand 5, single buffered']
    #allocation9 [shape = 's32[1]{0}', space=sflag, size = 0x4, scoped, tag = 'scoped memory for tpu_custom_call.1']
    #allocation10 [shape = 'u8[4096]{0}', space=vmem, size = 0x1000, scoped, tag = 'output window, operand 0, single buffered']
    %12 = vsyncpa [#allocation3], 0
    %13 = vsyncpa [#allocation6], 0
    %14 = vsyncpa [#allocation9], 0
    %15 = vsyncpa [#allocation4], 0
    // Predicated region
    $region2: #{tpu_custom_call.1} parent=1 // pred_check
      _
    $region3: #{tpu_custom_call.1} parent=1 // pred_check_branch
      %17 = sbr.rel (0) target = $region5
    $region4: #{tpu_custom_call.1} parent=1 // pred_region
      %s19 = ssub.s32 128, 128
      %20 = vsyncadd [#allocation3], %s19
      %s22 = sshll.u32 [#allocation2], 4
      %s23 = int_to_ptr.vmem [resolvable:$true] %s22
      %25 = dma.hbm_to_vmem [thread:$0]  %s0, 128, %s23, [#allocation3]
    $region5: #{tpu_custom_call.1} parent=1 // pred_fallthru
      _
    // Predicated region
    $region6: #{tpu_custom_call.1} parent=1 // pred_check
      _
    $region7: #{tpu_custom_call.1} parent=1 // pred_check_branch
      %27 = sbr.rel (0) target = $region9
    $region8: #{tpu_custom_call.1} parent=1 // pred_region
      %s29 = ssub.s32 512, 512
      %30 = vsyncadd [#allocation6], %s29
      %s31 = sshll.u32 [#allocation5], 4
      %s32 = int_to_ptr.vmem [resolvable:$true] %s31
      %37 = dma.hbm_to_vmem [thread:$0]  %s1, 512, %s32, [#allocation6], 128, 128, 8
    $region9: #{tpu_custom_call.1} parent=1 // pred_fallthru
      _
    // Predicated region
    $region10: #{tpu_custom_call.1} parent=1 // pred_check
      _
    $region11: #{tpu_custom_call.1} parent=1 // pred_check_branch
      %39 = sbr.rel (0) target = $region13
    $region12: #{tpu_custom_call.1} parent=1 // pred_region
      _
    $region13: #{tpu_custom_call.1} parent=1 // pred_fallthru
      _
    // Predicated region
    $region14: #{tpu_custom_call.1} parent=1 // pred_check
      _
    $region15: #{tpu_custom_call.1} parent=1 // pred_check_branch
      %41 = sbr.rel (0) target = $region17
    $region16: #{tpu_custom_call.1} parent=1 // pred_region
      %s43 = ssub.s32 2048, 2048
      %44 = vsyncadd [#allocation6], %s43
      %s45 = sshll.u32 [#allocation7], 4
      %s46 = int_to_ptr.vmem [resolvable:$true] %s45
      %51 = dma.hbm_to_vmem [thread:$0]  %s3, 2048, %s46, [#allocation6], 128, 128, 8
    $region17: #{tpu_custom_call.1} parent=1 // pred_fallthru
      _
    // Predicated region
    $region18: #{tpu_custom_call.1} parent=1 // pred_check
      _
    $region19: #{tpu_custom_call.1} parent=1 // pred_check_branch
      %53 = sbr.rel (0) target = $region21
    $region20: #{tpu_custom_call.1} parent=1 // pred_region
      _
    $region21: #{tpu_custom_call.1} parent=1 // pred_fallthru
      _
    // Predicated region
    $region22: #{tpu_custom_call.1} parent=1 // pred_check
      _
    $region23: #{tpu_custom_call.1} parent=1 // pred_check_branch
      %55 = sbr.rel (0) target = $region25
    $region24: #{tpu_custom_call.1} parent=1 // pred_region
      %s57 = ssub.s32 2048, 2048
      %58 = vsyncadd [#allocation9], %s57
      %s59 = sshll.u32 [#allocation8], 4
      %s60 = int_to_ptr.vmem [resolvable:$true] %s59
      %65 = dma.hbm_to_vmem [thread:$0]  %s5, 2048, %s60, [#allocation9], 128, 128, 8
    $region25: #{tpu_custom_call.1} parent=1 // pred_fallthru
      _
    // Predicated region
    $region26: #{tpu_custom_call.1} parent=1 // pred_check
      _
    $region27: #{tpu_custom_call.1} parent=1 // pred_check_branch
      %67 = sbr.rel (0) target = $region29
    $region28: #{tpu_custom_call.1} parent=1 // pred_region
      _
    $region29: #{tpu_custom_call.1} parent=1 // pred_fallthru
      _
    // Predicated region
    $region30: #{tpu_custom_call.1} parent=1 // pred_check
      _
    $region31: #{tpu_custom_call.1} parent=1 // pred_check_branch
      %69 = sbr.rel (0) target = $region33
    $region32: #{tpu_custom_call.1} parent=1 // pred_region
      %70 = dma.done [#allocation3], 128
    $region33: #{tpu_custom_call.1} parent=1 // pred_fallthru
      _
    // Predicated region
    $region34: #{tpu_custom_call.1} parent=1 // pred_check
      _
    $region35: #{tpu_custom_call.1} parent=1 // pred_check_branch
      %72 = sbr.rel (0) target = $region37
    $region36: #{tpu_custom_call.1} parent=1 // pred_region
      %73 = dma.done [#allocation6], 512
    $region37: #{tpu_custom_call.1} parent=1 // pred_fallthru
      _
    // Predicated region
    $region38: #{tpu_custom_call.1} parent=1 // pred_check
      _
    $region39: #{tpu_custom_call.1} parent=1 // pred_check_branch
      %75 = sbr.rel (0) target = $region41
    $region40: #{tpu_custom_call.1} parent=1 // pred_region
      %76 = dma.done [#allocation6], 2048
    $region41: #{tpu_custom_call.1} parent=1 // pred_fallthru
      _
    // Predicated region
    $region42: #{tpu_custom_call.1} parent=1 // pred_check
      _
    $region43: #{tpu_custom_call.1} parent=1 // pred_check_branch
      %78 = sbr.rel (0) target = $region45
    $region44: #{tpu_custom_call.1} parent=1 // pred_region
      %79 = dma.done [#allocation9], 2048
    $region45: #{tpu_custom_call.1} parent=1 // pred_fallthru
      _
    %v80 = vld [vmem:[#allocation2] sm:$0xff]
    %v81 = vld [vmem:[#allocation5] sm:$0xff]
    %v82 = vld [vmem:[#allocation5 + $0x8] sm:$0xff]
    %v83 = vld [vmem:[#allocation5 + $0x10] sm:$0xff]
    %v84 = vld [vmem:[#allocation5 + $0x18] sm:$0xff]
    %v85 = vld [vmem:[%s2] sm:$0x1]
    %v87 = vlaneseq
    %v88 = vshrl.u32 %v87, 7
    %v89 = vsub.s32 0, %v88
    %v90 = vrot.slane %v85, %v89
    %vm92 = vcmask 261120
    %v94 = vsel %vm92, %v80, 0
    %96 = vmatprep.subr.mxu0 0.0
    %97 = vmatpush1.msra.mxu0 %v81
    %98 = vmatprep.subr.mxu0 0.0
    %99 = vmatpush1.msra.mxu0 %v82
    %100 = vmatprep.subr.mxu0 0.0
    %101 = vmatpush1.msra.mxu0 %v83
    %102 = vmatprep.subr.mxu0 0.0
    %103 = vmatpush1.msra.mxu0 %v84
    %104 = vmatprep.subr.mxu0 0.0
    %105 = vmatpush1.msra.mxu0 0.0
    %106 = vmatprep.subr.mxu0 0.0
    %107 = vmatpush1.msra.mxu0 0.0
    %108 = vmatprep.subr.mxu0 0.0
    %109 = vmatpush1.msra.mxu0 0.0
    %110 = vmatprep.subr.mxu0 0.0
    %111 = vmatpush1.msra.mxu0 0.0
    %112 = vmatprep.subr.mxu0 0.0
    %113 = vmatpush1.msra.mxu0 0.0
    %114 = vmatprep.subr.mxu0 0.0
    %115 = vmatpush1.msra.mxu0 0.0
    %116 = vmatprep.subr.mxu0 0.0
    %117 = vmatpush1.msra.mxu0 0.0
    %118 = vmatprep.subr.mxu0 0.0
    %119 = vmatpush1.msra.mxu0 0.0
    %120 = vmatprep.subr.mxu0 0.0
    %121 = vmatpush1.msra.mxu0 0.0
    %122 = vmatprep.subr.mxu0 0.0
    %123 = vmatpush1.msra.mxu0 0.0
    %124 = vmatprep.subr.mxu0 0.0
    %125 = vmatpush1.msra.mxu0 0.0
    %126 = vmatprep.subr.mxu0 0.0
    %127 = vmatpush1.msra.mxu0 0.0
    %128 = vmatprep.subr.mxu0 0.0
    %129 = vmatpush1.msra.mxu0 0.0
    %130 = vmatprep.subr.mxu0 0.0
    %131 = vmatpush1.msra.mxu0 0.0
    %132 = vmatprep.subr.mxu0 0.0
    %133 = vmatpush1.msra.mxu0 0.0
    %134 = vmatprep.subr.mxu0 0.0
    %135 = vmatpush1.msra.mxu0 0.0
    %136 = vmatprep.subr.mxu0 0.0
    %137 = vmatpush1.msra.mxu0 0.0
    %138 = vmatprep.subr.mxu0 0.0
    %139 = vmatpush1.msra.mxu0 0.0
    %140 = vmatprep.subr.mxu0 0.0
    %141 = vmatpush1.msra.mxu0 0.0
    %142 = vmatprep.subr.mxu0 0.0
    %143 = vmatpush1.msra.mxu0 0.0
    %144 = vmatprep.subr.mxu0 0.0
    %145 = vmatpush1.msra.mxu0 0.0
    %146 = vmatprep.subr.mxu0 0.0
    %147 = vmatpush1.msra.mxu0 0.0
    %148 = vmatprep.subr.mxu0 0.0
    %149 = vmatpush1.msra.mxu0 0.0
    %150 = vmatprep.subr.mxu0 0.0
    %151 = vmatpush1.msra.mxu0 0.0
    %152 = vmatprep.subr.mxu0 0.0
    %153 = vmatpush1.msra.mxu0 0.0
    %154 = vmatprep.subr.mxu0 0.0
    %155 = vmatpush1.msra.mxu0 0.0
    %156 = vmatprep.subr.mxu0 0.0
    %157 = vmatpush1.msra.mxu0 0.0
    %158 = vmatprep.subr.mxu0 0.0
    %159 = vmatpush1.msra.mxu0 0.0
    %160 = vmatprep.mubr.f32.mxu0 0.0
    %161 = vmatmul.mubr.f32.gmra.mrb[0].mxu0 %v94
    %v162 = vpop.f32.mrb[0].mxu0
    %v163 = vadd.f32 %v90, %v162
    %v164 = vpop.f32.mrb[0].mxu0
    %165 = vdwg.mxu0
    %v166 = vmax.f32 %v163, 0.0
    %v167 = vld [vmem:[#allocation7] sm:$0xff]
    %v168 = vld [vmem:[#allocation7 + $0x8] sm:$0xff]
    %v169 = vld [vmem:[#allocation7 + $0x10] sm:$0xff]
    %v170 = vld [vmem:[#allocation7 + $0x18] sm:$0xff]
    %v171 = vld [vmem:[#allocation7 + $0x20] sm:$0xff]
    %v172 = vld [vmem:[#allocation7 + $0x28] sm:$0xff]
    %v173 = vld [vmem:[#allocation7 + $0x30] sm:$0xff]
    %v174 = vld [vmem:[#allocation7 + $0x38] sm:$0xff]
    %v175 = vld [vmem:[#allocation7 + $0x40] sm:$0xff]
    %v176 = vld [vmem:[#allocation7 + $0x48] sm:$0xff]
    %v177 = vld [vmem:[#allocation7 + $0x50] sm:$0xff]
    %v178 = vld [vmem:[#allocation7 + $0x58] sm:$0xff]
    %v179 = vld [vmem:[#allocation7 + $0x60] sm:$0xff]
    %v180 = vld [vmem:[#allocation7 + $0x68] sm:$0xff]
    %v181 = vld [vmem:[#allocation7 + $0x70] sm:$0xff]
    %v182 = vld [vmem:[#allocation7 + $0x78] sm:$0xff]
    %v183 = vld [vmem:[%s4] sm:$0x1]
    %v185 = vlaneseq
    %v186 = vshrl.u32 %v185, 7
    %v187 = vsub.s32 0, %v186
    %v188 = vrot.slane %v183, %v187
    %190 = vmatprep.subr.mxu0 0.0
    %191 = vmatpush1.msra.mxu0 %v167
    %192 = vmatprep.subr.mxu0 0.0
    %193 = vmatpush1.msra.mxu0 %v168
    %194 = vmatprep.subr.mxu0 0.0
    %195 = vmatpush1.msra.mxu0 %v169
    %196 = vmatprep.subr.mxu0 0.0
    %197 = vmatpush1.msra.mxu0 %v170
    %198 = vmatprep.subr.mxu0 0.0
    %199 = vmatpush1.msra.mxu0 %v171
    %200 = vmatprep.subr.mxu0 0.0
    %201 = vmatpush1.msra.mxu0 %v172
    %202 = vmatprep.subr.mxu0 0.0
    %203 = vmatpush1.msra.mxu0 %v173
    %204 = vmatprep.subr.mxu0 0.0
    %205 = vmatpush1.msra.mxu0 %v174
    %206 = vmatprep.subr.mxu0 0.0
    %207 = vmatpush1.msra.mxu0 %v175
    %208 = vmatprep.subr.mxu0 0.0
    %209 = vmatpush1.msra.mxu0 %v176
    %210 = vmatprep.subr.mxu0 0.0
    %211 = vmatpush1.msra.mxu0 %v177
    %212 = vmatprep.subr.mxu0 0.0
    %213 = vmatpush1.msra.mxu0 %v178
    %214 = vmatprep.subr.mxu0 0.0
    %215 = vmatpush1.msra.mxu0 %v179
    %216 = vmatprep.subr.mxu0 0.0
    %217 = vmatpush1.msra.mxu0 %v180
    %218 = vmatprep.subr.mxu0 0.0
    %219 = vmatpush1.msra.mxu0 %v181
    %220 = vmatprep.subr.mxu0 0.0
    %221 = vmatpush1.msra.mxu0 %v182
    %222 = vmatprep.subr.mxu0 0.0
    %223 = vmatpush1.msra.mxu0 0.0
    %224 = vmatprep.subr.mxu0 0.0
    %225 = vmatpush1.msra.mxu0 0.0
    %226 = vmatprep.subr.mxu0 0.0
    %227 = vmatpush1.msra.mxu0 0.0
    %228 = vmatprep.subr.mxu0 0.0
    %229 = vmatpush1.msra.mxu0 0.0
    %230 = vmatprep.subr.mxu0 0.0
    %231 = vmatpush1.msra.mxu0 0.0
    %232 = vmatprep.subr.mxu0 0.0
    %233 = vmatpush1.msra.mxu0 0.0
    %234 = vmatprep.subr.mxu0 0.0
    %235 = vmatpush1.msra.mxu0 0.0
    %236 = vmatprep.subr.mxu0 0.0
    %237 = vmatpush1.msra.mxu0 0.0
    %238 = vmatprep.subr.mxu0 0.0
    %239 = vmatpush1.msra.mxu0 0.0
    %240 = vmatprep.subr.mxu0 0.0
    %241 = vmatpush1.msra.mxu0 0.0
    %242 = vmatprep.subr.mxu0 0.0
    %243 = vmatpush1.msra.mxu0 0.0
    %244 = vmatprep.subr.mxu0 0.0
    %245 = vmatpush1.msra.mxu0 0.0
    %246 = vmatprep.subr.mxu0 0.0
    %247 = vmatpush1.msra.mxu0 0.0
    %248 = vmatprep.subr.mxu0 0.0
    %249 = vmatpush1.msra.mxu0 0.0
    %250 = vmatprep.subr.mxu0 0.0
    %251 = vmatpush1.msra.mxu0 0.0
    %252 = vmatprep.subr.mxu0 0.0
    %253 = vmatpush1.msra.mxu0 0.0
    %254 = vmatprep.mubr.f32.mxu0 0.0
    %255 = vmatmul.mubr.f32.gmra.mrb[0].mxu0 %v166
    %v256 = vpop.f32.mrb[0].mxu0
    %v257 = vadd.f32 %v188, %v256
    %v258 = vpop.f32.mrb[0].mxu0
    %259 = vdwg.mxu0
    %v260 = vld [vmem:[#allocation8] sm:$0xff]
    %v261 = vld [vmem:[#allocation8 + $0x8] sm:$0xff]
    %v262 = vld [vmem:[#allocation8 + $0x10] sm:$0xff]
    %v263 = vld [vmem:[#allocation8 + $0x18] sm:$0xff]
    %v264 = vld [vmem:[#allocation8 + $0x20] sm:$0xff]
    %v265 = vld [vmem:[#allocation8 + $0x28] sm:$0xff]
    %v266 = vld [vmem:[#allocation8 + $0x30] sm:$0xff]
    %v267 = vld [vmem:[#allocation8 + $0x38] sm:$0xff]
    %v268 = vld [vmem:[#allocation8 + $0x40] sm:$0xff]
    %v269 = vld [vmem:[#allocation8 + $0x48] sm:$0xff]
    %v270 = vld [vmem:[#allocation8 + $0x50] sm:$0xff]
    %v271 = vld [vmem:[#allocation8 + $0x58] sm:$0xff]
    %v272 = vld [vmem:[#allocation8 + $0x60] sm:$0xff]
    %v273 = vld [vmem:[#allocation8 + $0x68] sm:$0xff]
    %v274 = vld [vmem:[#allocation8 + $0x70] sm:$0xff]
    %v275 = vld [vmem:[#allocation8 + $0x78] sm:$0xff]
    %v276 = vld [vmem:[%s6] sm:$0x1]
    %v278 = vlaneseq
    %v279 = vshrl.u32 %v278, 7
    %v280 = vsub.s32 0, %v279
    %v281 = vrot.slane %v276, %v280
    %283 = vmatprep.subr.mxu0 0.0
    %284 = vmatpush1.msra.mxu0 %v260
    %285 = vmatprep.subr.mxu0 0.0
    %286 = vmatpush1.msra.mxu0 %v261
    %287 = vmatprep.subr.mxu0 0.0
    %288 = vmatpush1.msra.mxu0 %v262
    %289 = vmatprep.subr.mxu0 0.0
    %290 = vmatpush1.msra.mxu0 %v263
    %291 = vmatprep.subr.mxu0 0.0
    %292 = vmatpush1.msra.mxu0 %v264
    %293 = vmatprep.subr.mxu0 0.0
    %294 = vmatpush1.msra.mxu0 %v265
    %295 = vmatprep.subr.mxu0 0.0
    %296 = vmatpush1.msra.mxu0 %v266
    %297 = vmatprep.subr.mxu0 0.0
    %298 = vmatpush1.msra.mxu0 %v267
    %299 = vmatprep.subr.mxu0 0.0
    %300 = vmatpush1.msra.mxu0 %v268
    %301 = vmatprep.subr.mxu0 0.0
    %302 = vmatpush1.msra.mxu0 %v269
    %303 = vmatprep.subr.mxu0 0.0
    %304 = vmatpush1.msra.mxu0 %v270
    %305 = vmatprep.subr.mxu0 0.0
    %306 = vmatpush1.msra.mxu0 %v271
    %307 = vmatprep.subr.mxu0 0.0
    %308 = vmatpush1.msra.mxu0 %v272
    %309 = vmatprep.subr.mxu0 0.0
    %310 = vmatpush1.msra.mxu0 %v273
    %311 = vmatprep.subr.mxu0 0.0
    %312 = vmatpush1.msra.mxu0 %v274
    %313 = vmatprep.subr.mxu0 0.0
    %314 = vmatpush1.msra.mxu0 %v275
    %315 = vmatprep.subr.mxu0 0.0
    %316 = vmatpush1.msra.mxu0 0.0
    %317 = vmatprep.subr.mxu0 0.0
    %318 = vmatpush1.msra.mxu0 0.0
    %319 = vmatprep.subr.mxu0 0.0
    %320 = vmatpush1.msra.mxu0 0.0
    %321 = vmatprep.subr.mxu0 0.0
    %322 = vmatpush1.msra.mxu0 0.0
    %323 = vmatprep.subr.mxu0 0.0
    %324 = vmatpush1.msra.mxu0 0.0
    %325 = vmatprep.subr.mxu0 0.0
    %326 = vmatpush1.msra.mxu0 0.0
    %327 = vmatprep.subr.mxu0 0.0
    %328 = vmatpush1.msra.mxu0 0.0
    %329 = vmatprep.subr.mxu0 0.0
    %330 = vmatpush1.msra.mxu0 0.0
    %331 = vmatprep.subr.mxu0 0.0
    %332 = vmatpush1.msra.mxu0 0.0
    %333 = vmatprep.subr.mxu0 0.0
    %334 = vmatpush1.msra.mxu0 0.0
    %335 = vmatprep.subr.mxu0 0.0
    %336 = vmatpush1.msra.mxu0 0.0
    %337 = vmatprep.subr.mxu0 0.0
    %338 = vmatpush1.msra.mxu0 0.0
    %339 = vmatprep.subr.mxu0 0.0
    %340 = vmatpush1.msra.mxu0 0.0
    %341 = vmatprep.subr.mxu0 0.0
    %342 = vmatpush1.msra.mxu0 0.0
    %343 = vmatprep.subr.mxu0 0.0
    %344 = vmatpush1.msra.mxu0 0.0
    %345 = vmatprep.subr.mxu0 0.0
    %346 = vmatpush1.msra.mxu0 0.0
    %347 = vmatprep.mubr.f32.mxu0 0.0
    %348 = vmatmul.mubr.f32.gmra.mrb[0].mxu0 %v257
    %v349 = vpop.f32.mrb[0].mxu0
    %v350 = vadd.f32 %v281, %v349
    %v351 = vpop.f32.mrb[0].mxu0
    %352 = vdwg.mxu0
    %353 = vst [vmem:[#allocation10] sm:$0xff] %v350
    // Predicated region
    $region46: #{tpu_custom_call.1} parent=1 // pred_check
      _
    $region47: #{tpu_custom_call.1} parent=1 // pred_check_branch
      %355 = sbr.rel (0) target = $region49
    $region48: #{tpu_custom_call.1} parent=1 // pred_region
      %s357 = ssub.s32 128, 128
      %358 = vsyncadd [#allocation4], %s357
      %s360 = sshll.u32 [#allocation10], 4
      %s361 = int_to_ptr.vmem [resolvable:$true] %s360
      %363 = dma.vmem_to_hbm [thread:$0]  %s361, 128, %s7, [#allocation4]
    $region49: #{tpu_custom_call.1} parent=1 // pred_fallthru
      _
    // Predicated region
    $region50: #{tpu_custom_call.1} parent=1 // pred_check
      _
    $region51: #{tpu_custom_call.1} parent=1 // pred_check_branch
      %365 = sbr.rel (0) target = $region53
    $region52: #{tpu_custom_call.1} parent=1 // pred_region
      %366 = dma.done [#allocation4], 128
    $region53: #{tpu_custom_call.1} parent=1 // pred_fallthru
      _
    %367 = vsyncpa [#allocation3], 1
    %368 = vsyncpa [#allocation6], 1
    %369 = vsyncpa [#allocation9], 1
    %370 = vsyncpa [#allocation4], 1

</llo_original>
